<compile_context>
chip_gen: v6e
topology: v6e:2x2x1
jax: 0.10.0
libtpu: 0.0.40
codegen_flags: <defaults>
</compile_context>

<pallas_src>
import functools

import jax
import jax.numpy as jnp
from jax import lax
from jax.experimental import pallas as pl
from jax.experimental.pallas import tpu as pltpu

KH = KW = 4
STRIDE = 2
PAD = 1
BN_EPS = 1e-10
LEAKY_SLOPE = 0.2


def _round_up(x, m):
    return ((x + m - 1) // m) * m


def _vmem_capacity_bytes():
    try:
        return int(pltpu.get_tpu_info().vmem_capacity_bytes)
    except Exception:
        return 64 * 1024 * 1024      # conservative (v7x-sized) fallback


def _vmem_limit(need_bytes, cap):
    return int(min(max(int(1.3 * need_bytes) + (1 << 20), 4 << 20),
                   int(0.9 * cap)))


def _phase1_bytes_per_step(tm, K, Cout, mm_item, inter_item):
    # steady-state, double-buffered pipeline footprint of phase 1
    return (2 * K * tm * mm_item          # patches tile (double-buffered)
            + Cout * K * mm_item          # weights (resident)
            + 2 * Cout * tm * inter_item  # conv-out tile (double-buffered)
            + 4 * Cout * 4                # partial sum / sumsq blocks
            + (1 << 20))                  # slack for compiler scratch


def _pick_tile_m(requested, M, K, Cout, mm_item, inter_item):
    """Largest tile (<= requested) whose phase-1 footprint fits scoped VMEM."""
    cap = _vmem_capacity_bytes()
    budget = int(0.72 * cap)
    m_full = _round_up(M, 128)
    for tm in (2048, 1024, 512, 256, 128):
        if tm > requested:
            continue
        tm_eff = min(tm, m_full)
        if _phase1_bytes_per_step(tm_eff, K, Cout, mm_item, inter_item) <= budget:
            return tm_eff, cap
    return min(128, m_full), cap


# --------------------------------------------------------------------------- #
# Kernels
# --------------------------------------------------------------------------- #
def _fused_kernel(m_total, normalize, w_ref, p_ref, gamma_ref, beta_ref, o_ref):
    """Single-tile path: conv matmul + BN (training batch stats) + LeakyReLU.

    w_ref : (Cout, K)   p_ref : (K, Mp)   gamma/beta : (Cout, 1) f32
    o_ref : (Cout, Mp)
    """
    y = lax.dot_general(w_ref[...], p_ref[...],
                        dimension_numbers=(((1,), (0,)), ((), ())),
                        preferred_element_type=jnp.float32)      # (Cout, Mp) f32
    if normalize:
        inv_m = 1.0 / m_total
        # padded columns are exactly zero, so they add nothing to the sums;
        # dividing by the real M keeps the statistics correct.
        mean = jnp.sum(y, axis=1, keepdims=True) * inv_m
        var = jnp.maximum(jnp.sum(y * y, axis=1, keepdims=True) * inv_m
                          - mean * mean, 0.0)                    # clamp cancellation
        rstd = lax.rsqrt(var + BN_EPS)
        scale = gamma_ref[...] * rstd
        shift = beta_ref[...] - mean * scale
        y = y * scale + shift
    o_ref[...] = jnp.where(y > 0, y, LEAKY_SLOPE * y).astype(o_ref.dtype)


def _conv_stats_kernel(w_ref, p_ref, y_ref, sum_ref, sumsq_ref):
    """Phase 1: one MXU matmul per M-tile + per-split per-channel stats.

    grid = (num_splits, tiles_per_split); sum/sumsq blocks (1, Cout, 1) are
    resident across the inner ("arbitrary") axis, one block per split.
    Stats are computed from the f32 value in-register; only the stored
    intermediate y_ref may be bf16.
    """
    @pl.when(pl.program_id(1) == 0)
    def _():
        sum_ref[...] = jnp.zeros_like(sum_ref)
        sumsq_ref[...] = jnp.zeros_like(sumsq_ref)

    y = lax.dot_general(w_ref[...], p_ref[...],
                        dimension_numbers=(((1,), (0,)), ((), ())),
                        preferred_element_type=jnp.float32)      # (Cout, TM) f32
    y_ref[...] = y.astype(y_ref.dtype)                           # bf16 by default
    sum_ref[...] += jnp.sum(y, axis=1, keepdims=True)[None]
    sumsq_ref[...] += jnp.sum(y * y, axis=1, keepdims=True)[None]


def _bn_act_kernel(y_ref, scale_ref, shift_ref, o_ref):
    """Phase 2: pre-folded BN affine + LeakyReLU (f32 math, lane-dense tiles)."""
    y = y_ref[...].astype(jnp.float32)
    y = y * scale_ref[...] + shift_ref[...]
    o_ref[...] = jnp.where(y > 0, y, LEAKY_SLOPE * y).astype(o_ref.dtype)


# --------------------------------------------------------------------------- #
# Wrapper
# --------------------------------------------------------------------------- #
def unet_down_forward(x_nchw, z, w_oihw, gamma, beta, *,
                      normalize=True, matmul_dtype=jnp.bfloat16,
                      tile_m=1024, out_dtype=None, channel_major_output=False):
    """Forward of UNetDown. x_nchw: (N, Cx, H, W); z: (N, num_class) or None."""
    N, _, H, W = x_nchw.shape
    assert H % STRIDE == 0 and W % STRIDE == 0, "parity/stride path needs even H, W"
    out_dtype = x_nchw.dtype if out_dtype is None else out_dtype

    # Channel-major layout (C, N, H, W): one small-axis swap of the input (the
    # lane axis W is untouched). The 16x im2col slab below is then produced
    # with NO further minor-axis shuffles.
    x_cnhw = jnp.transpose(x_nchw, (1, 0, 2, 3))
    if z is not None:
        assert H == W, "original module tiles z assuming square spatial dims"
        z_cn = jnp.transpose(z, (1, 0)).astype(x_cnhw.dtype)
        z_tile = jnp.broadcast_to(z_cn[:, :, None, None], (z.shape[1], N, H, W))
        x_cnhw = jnp.concatenate([x_cnhw, z_tile], axis=0)

    Cin = x_cnhw.shape[0]
    Cout = w_oihw.shape[0]
    assert w_oihw.shape == (Cout, Cin, KH, KW)

    Ho = (H + 2 * PAD - KH) // STRIDE + 1
    Wo = (W + 2 * PAD - KW) // STRIDE + 1
    M = N * Ho * Wo
    K = KH * KW * Cin

    # im2col straight from channel-major: (K, M) with K ordered (kh, kw, cin).
    x_pad = jnp.pad(x_cnhw, ((0, 0), (0, 0), (PAD, PAD), (PAD, PAD)))
    taps = [x_pad[:, :, kh:kh + STRIDE * Ho:STRIDE, kw:kw + STRIDE * Wo:STRIDE]
            for kh in range(KH) for kw in range(KW)]     # 16 x (Cin, N, Ho, Wo)
    patches = jnp.stack(taps, axis=0).reshape(K, M).astype(matmul_dtype)
    # weights (Cout, Cin, KH, KW) -> (Cout, KH, KW, Cin) -> (Cout, K); tiny.
    w2d = jnp.transpose(w_oihw, (0, 2, 3, 1)).reshape(Cout, K).astype(matmul_dtype)

    mm_item = jnp.dtype(matmul_dtype).itemsize
    inter_dtype = jnp.dtype(matmul_dtype)        # bf16 intermediate by default
    inter_item = inter_dtype.itemsize
    out_item = jnp.dtype(out_dtype).itemsize

    tm, vmem_cap = _pick_tile_m(tile_m, M, K, Cout, mm_item, inter_item)
    m_pad = _round_up(M, tm)
    num_tiles = m_pad // tm

    gamma2d = gamma.reshape(Cout, 1).astype(jnp.float32)
    beta2d = beta.reshape(Cout, 1).astype(jnp.float32)

    if num_tiles == 1:
        # ---- single fused call: conv + stats + BN + LeakyReLU ---------------
        if m_pad != M:
            patches = jnp.pad(patches, ((0, 0), (0, m_pad - M)))
        need = (K * m_pad * mm_item + Cout * K * mm_item
                + Cout * m_pad * (4 + out_item) + 4 * Cout * 4 + (1 << 20))
        out_t = pl.pallas_call(
            functools.partial(_fused_kernel, float(M), normalize),
            out_shape=jax.ShapeDtypeStruct((Cout, m_pad), out_dtype),
            in_specs=[pl.BlockSpec(memory_space=pltpu.MemorySpace.VMEM)] * 4,
            out_specs=pl.BlockSpec(memory_space=pltpu.MemorySpace.VMEM),
            compiler_params=pltpu.CompilerParams(
                vmem_limit_bytes=_vmem_limit(need, vmem_cap)),
            cost_estimate=pl.CostEstimate(
                flops=2 * m_pad * K * Cout + 10 * Cout * m_pad,
                transcendentals=Cout,
                bytes_accessed=(K * m_pad * mm_item + Cout * K * mm_item
                                + Cout * m_pad * out_item + 4 * Cout * 4)),
        )(w2d, patches, gamma2d, beta2d)
    else:
        # ---- two-phase tiled path --------------------------------------------
        # Leading size-2 "parallel" axis shards the phase-1 M-tiles across v7x's
        # two TensorCores (per-split partial stats, combined in the wrapper);
        # on 1-TC chips (v5e/v6e) it is just a loop reordering.
        num_splits = 2 if num_tiles >= 2 else 1
        num_tiles = _round_up(num_tiles, num_splits)
        tiles_per_split = num_tiles // num_splits
        m_pad = num_tiles * tm
        if m_pad != M:
            patches = jnp.pad(patches, ((0, 0), (0, m_pad - M)))

        p1_need = _phase1_bytes_per_step(tm, K, Cout, mm_item, inter_item)
        conv_y, psum, psumsq = pl.pallas_call(
            _conv_stats_kernel,
            out_shape=(jax.ShapeDtypeStruct((Cout, m_pad), inter_dtype),
                       jax.ShapeDtypeStruct((num_splits, Cout, 1), jnp.float32),
                       jax.ShapeDtypeStruct((num_splits, Cout, 1), jnp.float32)),
            grid_spec=pltpu.PrefetchScalarGridSpec(
                num_scalar_prefetch=0,
                grid=(num_splits, tiles_per_split),
                in_specs=[pl.BlockSpec((Cout, K), lambda c, i: (0, 0)),
                          pl.BlockSpec((K, tm),
                                       lambda c, i: (0, c * tiles_per_split + i))],
                out_specs=(pl.BlockSpec((Cout, tm),
                                        lambda c, i: (0, c * tiles_per_split + i)),
                           pl.BlockSpec((1, Cout, 1), lambda c, i: (c, 0, 0)),
                           pl.BlockSpec((1, Cout, 1), lambda c, i: (c, 0, 0)))),
            compiler_params=pltpu.CompilerParams(
                dimension_semantics=("parallel", "arbitrary"),
                vmem_limit_bytes=_vmem_limit(p1_need, vmem_cap)),
            cost_estimate=pl.CostEstimate(
                flops=2 * m_pad * K * Cout,
                transcendentals=0,
                bytes_accessed=(K * m_pad * mm_item + Cout * K * mm_item
                                + Cout * m_pad * inter_item
                                + 2 * num_splits * Cout * 4)),
        )(w2d, patches)

        # Fold BN into one (scale, shift) pair, once (tiny wrapper-side math).
        if normalize:
            inv_m = 1.0 / M
            mean = jnp.sum(psum, axis=0) * inv_m                  # (Cout, 1)
            var = jnp.maximum(jnp.sum(psumsq, axis=0) * inv_m - mean * mean, 0.0)
            rstd = lax.rsqrt(var + BN_EPS)
            scale = gamma2d * rstd
            shift = beta2d - mean * scale
        else:
            scale = jnp.ones((Cout, 1), jnp.float32)
            shift = jnp.zeros((Cout, 1), jnp.float32)

        small_spec = pl.BlockSpec((Cout, 1), lambda i: (0, 0))
        p2_need = 2 * Cout * tm * (inter_item + out_item) + 2 * Cout * 4 + (1 << 20)
        out_t = pl.pallas_call(
            _bn_act_kernel,
            out_shape=jax.ShapeDtypeStruct((Cout, m_pad), out_dtype),
            grid_spec=pltpu.PrefetchScalarGridSpec(
                num_scalar_prefetch=0,
                grid=(num_tiles,),
                in_specs=[pl.BlockSpec((Cout, tm), lambda i: (0, i)),
                          small_spec, small_spec],
                out_specs=pl.BlockSpec((Cout, tm), lambda i: (0, i))),
            compiler_params=pltpu.CompilerParams(
                dimension_semantics=("parallel",),
                vmem_limit_bytes=_vmem_limit(p2_need, vmem_cap)),
            cost_estimate=pl.CostEstimate(
                flops=4 * Cout * m_pad,
                transcendentals=0,
                bytes_accessed=Cout * m_pad * (inter_item + out_item) + 2 * Cout * 4),
        )(conv_y, scale, shift)

    out_cm = out_t[:, :M].reshape(Cout, N, Ho, Wo)   # channel-major (Cout,N,Ho,Wo)
    if channel_major_output:
        # layer-chaining layout: the next UNetDown would re-im2col channel-major
        return out_cm
    return jnp.transpose(out_cm, (1, 0, 2, 3))       # NCHW (PyTorch convention)
    # TODO(synk): nn.Dropout is only instantiated when dropout>0 (default 0.0),
    # so it is an identity here; stochastic dropout is not implemented.


def _reference_forward(x_nchw, z, w_oihw, gamma, beta):
    """Pure-JAX reference mirroring the PyTorch forward (training-mode BN)."""
    if z is not None:
        N, _, H, W = x_nchw.shape
        tile = jnp.broadcast_to(z[:, :, None, None], (N, z.shape[1], H, W))
        x_nchw = jnp.concatenate([x_nchw, tile], axis=1)
    out = lax.conv_general_dilated(
        x_nchw, w_oihw, window_strides=(STRIDE, STRIDE),
        padding=((PAD, PAD), (PAD, PAD)),
        dimension_numbers=("NCHW", "OIHW", "NCHW"))
    mean = out.mean(axis=(0, 2, 3), keepdims=True)
    var = ((out - mean) ** 2).mean(axis=(0, 2, 3), keepdims=True)
    out = (out - mean) / jnp.sqrt(var + BN_EPS)
    out = out * gamma[None, :, None, None] + beta[None, :, None, None]
    return jnp.where(out > 0, out, LEAKY_SLOPE * out)


if __name__ == "__main__":
    # Module config: UNetDown(in_size=8, out_size=8, num_class=4)
    # called as forward(x, z) with x having in_size - num_class = 4 channels.
    key = jax.random.PRNGKey(0)
    kx, kz, kw, kg, kb, kx2, kz2 = jax.random.split(key, 7)

    N, Cx, H, W = 2, 4, 16, 16
    num_class = 4
    in_size = Cx + num_class       # 8
    out_size = 8

    x = jax.random.normal(kx, (N, Cx, H, W), jnp.float32)
    z = jax.random.normal(kz, (N, num_class), jnp.float32)
    conv_w = 0.1 * jax.random.normal(kw, (out_size, in_size, KH, KW), jnp.float32)
    bn_gamma = 1.0 + 0.1 * jax.random.normal(kg, (out_size,), jnp.float32)
    bn_beta = 0.1 * jax.random.normal(kb, (out_size,), jnp.float32)

    # --- toy shape: exercises the single fused-call path (num_tiles == 1) ----
    ref = jax.block_until_ready(_reference_forward(x, z, conv_w, bn_gamma, bn_beta))
    out_f32 = jax.block_until_ready(
        unet_down_forward(x, z, conv_w, bn_gamma, bn_beta,
                          matmul_dtype=jnp.float32))
    assert out_f32.shape == (N, out_size, H // 2, W // 2), out_f32.shape
    assert jnp.allclose(out_f32, ref, rtol=2e-3, atol=2e-3), \
        float(jnp.max(jnp.abs(out_f32 - ref)))
    out_bf16 = jax.block_until_ready(
        unet_down_forward(x, z, conv_w, bn_gamma, bn_beta))
    assert out_bf16.shape == (N, out_size, H // 2, W // 2), out_bf16.shape
    assert jnp.allclose(out_bf16, ref, rtol=5e-2, atol=5e-2), \
        float(jnp.max(jnp.abs(out_bf16 - ref)))

    # --- larger M with a forced small tile: exercises the two-phase tiled
    #     path (split partial stats + bf16 intermediate) ----------------------
    H2 = W2 = 32
    x2 = jax.random.normal(kx2, (N, Cx, H2, W2), jnp.float32)
    z2 = jax.random.normal(kz2, (N, num_class), jnp.float32)
    ref2 = jax.block_until_ready(
        _reference_forward(x2, z2, conv_w, bn_gamma, bn_beta))
    out2_f32 = jax.block_until_ready(
        unet_down_forward(x2, z2, conv_w, bn_gamma, bn_beta,
                          matmul_dtype=jnp.float32, tile_m=128))
    assert out2_f32.shape == (N, out_size, H2 // 2, W2 // 2), out2_f32.shape
    assert jnp.allclose(out2_f32, ref2, rtol=2e-3, atol=2e-3), \
        float(jnp.max(jnp.abs(out2_f32 - ref2)))
    out2_bf16 = jax.block_until_ready(
        unet_down_forward(x2, z2, conv_w, bn_gamma, bn_beta, tile_m=128))
    assert jnp.allclose(out2_bf16, ref2, rtol=5e-2, atol=5e-2), \
        float(jnp.max(jnp.abs(out2_bf16 - ref2)))

    print("KERNEL_OK")
</pallas_src>

<mosaic_0001>
module attributes {stable_mosaic.version = 11 : i64} {
  func.func @_fused_kernel(%arg0: memref<8x128xf32, #tpu.memory_space<vmem>>, %arg1: memref<128x128xf32, #tpu.memory_space<vmem>>, %arg2: memref<8x1xf32, #tpu.memory_space<vmem>>, %arg3: memref<8x1xf32, #tpu.memory_space<vmem>>, %arg4: memref<8x128xf32, #tpu.memory_space<vmem>>) attributes {dimension_semantics = [], scalar_prefetch = 0 : i64, scratch_operands = 0 : i64, tpu.core_type = #tpu.core_type<tc>} {
    %c0 = arith.constant 0 : index
    %c0_0 = arith.constant 0 : index
    %0 = vector.load %arg0[%c0, %c0_0] : memref<8x128xf32, #tpu.memory_space<vmem>>, vector<8x128xf32>
    %c0_1 = arith.constant 0 : index
    %c0_2 = arith.constant 0 : index
    %1 = vector.load %arg1[%c0_1, %c0_2] : memref<128x128xf32, #tpu.memory_space<vmem>>, vector<128x128xf32>
    %cst = arith.constant dense<0.000000e+00> : vector<8x128xf32>
    %2 = tpu.matmul %0, %1, %cst {dimension_numbers = #tpu.dot_dimension_numbers<[1], [0], [0], [1], [0, 0, 1, 1], [], []>} : vector<8x128xf32>, vector<128x128xf32>, vector<8x128xf32> -> vector<8x128xf32>
    %cst_3 = arith.constant dense<0.000000e+00> : vector<8xf32>
    %3 = vector.multi_reduction <add>, %2, %cst_3 [1] : vector<8x128xf32> to vector<8xf32>
    %4 = vector.shape_cast %3 : vector<8xf32> to vector<8x1xf32>
    %cst_4 = arith.constant 7.812500e-03 : f32
    %5 = vector.broadcast %cst_4 : f32 to vector<8x1xf32>
    %6 = arith.mulf %4, %5 : vector<8x1xf32>
    %7 = arith.mulf %2, %2 : vector<8x128xf32>
    %cst_5 = arith.constant dense<0.000000e+00> : vector<8xf32>
    %8 = vector.multi_reduction <add>, %7, %cst_5 [1] : vector<8x128xf32> to vector<8xf32>
    %9 = vector.shape_cast %8 : vector<8xf32> to vector<8x1xf32>
    %cst_6 = arith.constant 7.812500e-03 : f32
    %10 = vector.broadcast %cst_6 : f32 to vector<8x1xf32>
    %11 = arith.mulf %9, %10 : vector<8x1xf32>
    %12 = arith.mulf %6, %6 : vector<8x1xf32>
    %13 = arith.subf %11, %12 : vector<8x1xf32>
    %cst_7 = arith.constant 0.000000e+00 : f32
    %14 = vector.broadcast %cst_7 : f32 to vector<8x1xf32>
    %15 = arith.maximumf %13, %14 : vector<8x1xf32>
    %cst_8 = arith.constant 1.000000e-10 : f32
    %16 = vector.broadcast %cst_8 : f32 to vector<8x1xf32>
    %17 = arith.addf %15, %16 : vector<8x1xf32>
    %18 = math.rsqrt %17 : vector<8x1xf32>
    %c0_9 = arith.constant 0 : index
    %c0_10 = arith.constant 0 : index
    %19 = vector.load %arg2[%c0_9, %c0_10] : memref<8x1xf32, #tpu.memory_space<vmem>>, vector<8x1xf32>
    %20 = arith.mulf %19, %18 : vector<8x1xf32>
    %c0_11 = arith.constant 0 : index
    %c0_12 = arith.constant 0 : index
    %21 = vector.load %arg3[%c0_11, %c0_12] : memref<8x1xf32, #tpu.memory_space<vmem>>, vector<8x1xf32>
    %22 = arith.mulf %6, %20 : vector<8x1xf32>
    %23 = arith.subf %21, %22 : vector<8x1xf32>
    %24 = vector.broadcast %20 : vector<8x1xf32> to vector<8x128xf32>
    %25 = arith.mulf %2, %24 : vector<8x128xf32>
    %26 = vector.broadcast %23 : vector<8x1xf32> to vector<8x128xf32>
    %27 = arith.addf %25, %26 : vector<8x128xf32>
    %cst_13 = arith.constant 0.000000e+00 : f32
    %28 = vector.broadcast %cst_13 : f32 to vector<8x128xf32>
    %29 = arith.cmpf ogt, %27, %28 : vector<8x128xf32>
    %cst_14 = arith.constant 2.000000e-01 : f32
    %30 = vector.broadcast %cst_14 : f32 to vector<8x128xf32>
    %31 = arith.mulf %30, %27 : vector<8x128xf32>
    %32 = arith.select %29, %27, %31 : vector<8x128xi1>, vector<8x128xf32>
    %c0_15 = arith.constant 0 : index
    %c0_16 = arith.constant 0 : index
    %33 = vector.load %arg4[%c0_15, %c0_16] : memref<8x128xf32, #tpu.memory_space<vmem>>, vector<8x128xf32>
    tpu.vector_store %arg4[%c0_15, %c0_16], %32 {strides = array<i32>} : memref<8x128xf32, #tpu.memory_space<vmem>>, vector<8x128xf32>,
    return
  }
}

</mosaic_0001>

<llo_original>
// kernel: tpu_custom_call.1
$region0: #{tpu_custom_call.1}
  #allocation0 [shape = 'u32[]', space=smem, size = 0x4, offset = 0x4, fixed_abs, tag = 'smem constant byte address 0x4 - core index']
  #allocation1 [shape = 'u32[144,128]{1,0:T(1,128)}', space=vmem, size = 0x12000, scoped, tag = 'internal scratch']
  %s0 = inlined_call_operand.vmem [shape: f32[8,128], index: 0, kind: input, shape index: {}]
  %s1 = inlined_call_operand.hbm [shape: f32[128,128], index: 1, kind: input, shape index: {}]
  %s2 = inlined_call_operand.vmem [shape: f32[8,1], index: 2, kind: input, shape index: {}]
  %s3 = inlined_call_operand.vmem [shape: f32[8,1], index: 3, kind: input, shape index: {}]
  %s4 = inlined_call_operand.hbm [shape: f32[8,128], index: 4, kind: output, shape index: {}]
  %s5 = sld [smem:[#allocation0]]
  $region30: #{tpu_custom_call.1} parent=0
    _
  %s7 = ssub.s32 1, %s5
  %s8 = scalar_select 0, %s7, %s5
  $region1: #{tpu_custom_call.1} parent=0
    #allocation2 [shape = 'u8[65536]{0}', space=vmem, size = 0x10000, scoped, tag = 'input window, operand 1, single buffered']
    #allocation3 [shape = 's32[1]{0}', space=sflag, size = 0x4, scoped, tag = 'scoped memory for tpu_custom_call.1']
    #allocation4 [shape = 's32[1]{0}', space=sflag, size = 0x4, scoped, tag = 'scoped memory for tpu_custom_call.1']
    #allocation5 [shape = 'u8[4096]{0}', space=vmem, size = 0x1000, scoped, tag = 'output window, operand 0, single buffered']
    %9 = vsyncpa [#allocation3], 0
    %10 = vsyncpa [#allocation4], 0
    // Predicated region
    $region2: #{tpu_custom_call.1} parent=1 // pred_check
      _
    $region3: #{tpu_custom_call.1} parent=1 // pred_check_branch
      %12 = sbr.rel (0) target = $region5
    $region4: #{tpu_custom_call.1} parent=1 // pred_region
      _
    $region5: #{tpu_custom_call.1} parent=1 // pred_fallthru
      _
    // Predicated region
    $region6: #{tpu_custom_call.1} parent=1 // pred_check
      _
    $region7: #{tpu_custom_call.1} parent=1 // pred_check_branch
      %14 = sbr.rel (0) target = $region9
    $region8: #{tpu_custom_call.1} parent=1 // pred_region
      %s16 = ssub.s32 2048, 2048
      %17 = vsyncadd [#allocation3], %s16
      %s18 = sshll.u32 [#allocation2], 4
      %s19 = int_to_ptr.vmem [resolvable:$true] %s18
      %24 = dma.hbm_to_vmem [thread:$0]  %s1, 2048, %s19, [#allocation3], 128, 128, 8
    $region9: #{tpu_custom_call.1} parent=1 // pred_fallthru
      _
    // Predicated region
    $region10: #{tpu_custom_call.1} parent=1 // pred_check
      _
    $region11: #{tpu_custom_call.1} parent=1 // pred_check_branch
      %26 = sbr.rel (0) target = $region13
    $region12: #{tpu_custom_call.1} parent=1 // pred_region
      _
    $region13: #{tpu_custom_call.1} parent=1 // pred_fallthru
      _
    // Predicated region
    $region14: #{tpu_custom_call.1} parent=1 // pred_check
      _
    $region15: #{tpu_custom_call.1} parent=1 // pred_check_branch
      %28 = sbr.rel (0) target = $region17
    $region16: #{tpu_custom_call.1} parent=1 // pred_region
      _
    $region17: #{tpu_custom_call.1} parent=1 // pred_fallthru
      _
    // Predicated region
    $region18: #{tpu_custom_call.1} parent=1 // pred_check
      _
    $region19: #{tpu_custom_call.1} parent=1 // pred_check_branch
      %30 = sbr.rel (0) target = $region21
    $region20: #{tpu_custom_call.1} parent=1 // pred_region
      %31 = dma.done [#allocation3], 2048
    $region21: #{tpu_custom_call.1} parent=1 // pred_fallthru
      _
    %v32 = vld [vmem:[%s0] sm:$0xff]
    %v33 = vld [vmem:[#allocation2] sm:$0xff]
    %v34 = vld [vmem:[#allocation2 + $0x8] sm:$0xff]
    %v35 = vld [vmem:[#allocation2 + $0x10] sm:$0xff]
    %v36 = vld [vmem:[#allocation2 + $0x18] sm:$0xff]
    %v37 = vld [vmem:[#allocation2 + $0x20] sm:$0xff]
    %v38 = vld [vmem:[#allocation2 + $0x28] sm:$0xff]
    %v39 = vld [vmem:[#allocation2 + $0x30] sm:$0xff]
    %v40 = vld [vmem:[#allocation2 + $0x38] sm:$0xff]
    %v41 = vld [vmem:[#allocation2 + $0x40] sm:$0xff]
    %v42 = vld [vmem:[#allocation2 + $0x48] sm:$0xff]
    %v43 = vld [vmem:[#allocation2 + $0x50] sm:$0xff]
    %v44 = vld [vmem:[#allocation2 + $0x58] sm:$0xff]
    %v45 = vld [vmem:[#allocation2 + $0x60] sm:$0xff]
    %v46 = vld [vmem:[#allocation2 + $0x68] sm:$0xff]
    %v47 = vld [vmem:[#allocation2 + $0x70] sm:$0xff]
    %v48 = vld [vmem:[#allocation2 + $0x78] sm:$0xff]
    %49 = vmatprep.subr.mxu0 0.0
    %50 = vmatpush1.msra.mxu0 %v48
    %51 = vmatprep.subr.mxu0 0.0
    %52 = vmatpush1.msra.mxu0 %v47
    %53 = vmatprep.subr.mxu0 0.0
    %54 = vmatpush1.msra.mxu0 %v46
    %55 = vmatprep.subr.mxu0 0.0
    %56 = vmatpush1.msra.mxu0 %v45
    %57 = vmatprep.subr.mxu0 0.0
    %58 = vmatpush1.msra.mxu0 %v44
    %59 = vmatprep.subr.mxu0 0.0
    %60 = vmatpush1.msra.mxu0 %v43
    %61 = vmatprep.subr.mxu0 0.0
    %62 = vmatpush1.msra.mxu0 %v42
    %63 = vmatprep.subr.mxu0 0.0
    %64 = vmatpush1.msra.mxu0 %v41
    %65 = vmatprep.subr.mxu0 0.0
    %66 = vmatpush1.msra.mxu0 %v40
    %67 = vmatprep.subr.mxu0 0.0
    %68 = vmatpush1.msra.mxu0 %v39
    %69 = vmatprep.subr.mxu0 0.0
    %70 = vmatpush1.msra.mxu0 %v38
    %71 = vmatprep.subr.mxu0 0.0
    %72 = vmatpush1.msra.mxu0 %v37
    %73 = vmatprep.subr.mxu0 0.0
    %74 = vmatpush1.msra.mxu0 %v36
    %75 = vmatprep.subr.mxu0 0.0
    %76 = vmatpush1.msra.mxu0 %v35
    %77 = vmatprep.subr.mxu0 0.0
    %78 = vmatpush1.msra.mxu0 %v34
    %79 = vmatprep.subr.mxu0 0.0
    %80 = vmatpush1.msra.mxu0 %v33
    %81 = vmatprep.subr.mxu0 0.0
    %82 = vmatpush2.msra.mxu0 0.0
    %83 = vmatprep.subr.mxu0 0.0
    %84 = vmatpush2.msra.mxu0 0.0
    %85 = vmatprep.subr.mxu0 0.0
    %86 = vmatpush2.msra.mxu0 0.0
    %87 = vmatprep.subr.mxu0 0.0
    %88 = vmatpush2.msra.mxu0 0.0
    %89 = vmatprep.subr.mxu0 0.0
    %90 = vmatpush2.msra.mxu0 0.0
    %91 = vmatprep.subr.mxu0 0.0
    %92 = vmatpush2.msra.mxu0 0.0
    %93 = vmatprep.subr.mxu0 0.0
    %94 = vmatpush2.msra.mxu0 0.0
    %95 = vmatprep.subr.mxu0 0.0
    %96 = vmatpush2.msra.mxu0 0.0
    %97 = vmatprep.subr.mxu0 0.0
    %98 = vmatpush2.msra.mxu0 0.0
    %99 = vmatprep.subr.mxu0 0.0
    %100 = vmatpush2.msra.mxu0 0.0
    %101 = vmatprep.subr.mxu0 0.0
    %102 = vmatpush2.msra.mxu0 0.0
    %103 = vmatprep.subr.mxu0 0.0
    %104 = vmatpush2.msra.mxu0 0.0
    %105 = vmatprep.subr.mxu0 0.0
    %106 = vmatpush2.msra.mxu0 0.0
    %107 = vmatprep.subr.mxu0 0.0
    %108 = vmatpush2.msra.mxu0 0.0
    %109 = vmatprep.subr.mxu0 0.0
    %110 = vmatpush2.msra.mxu0 0.0
    %111 = vmatprep.subr.mxu0 0.0
    %112 = vmatpush2.msra.mxu0 0.0
    %113 = vmatprep.mubr.f32.mxu0 0.0
    %114 = vmatmul.mubr.f32.gmra.mxu0 %v32
    %v115 = vpop.f32.mrf.mxu0
    %v116 = vadd.f32 0.0, %v115
    %v117 = vpop.f32.mrf.mxu0
    %118 = vdwg.mxu0
    %119 = vadd.xlane.f32.xlu0 %v116
    %v120 = vpop.xlane.xlu0 %119
    %v121 = vmul.f32 %v120, 0.0078125
    %v122 = vmul.f32 %v116, %v116
    %123 = vadd.xlane.f32.xlu0 %v122
    %v124 = vpop.xlane.xlu0 %123
    %v125 = vmul.f32 %v124, 0.0078125
    %v126 = vmul.f32 %v121, %v121
    %v127 = vsub.f32 %v125, %v126
    %v128 = vmax.f32 %v127, 0.0
    %v129 = vadd.f32 %v128, 1e-10
    %v130 = vrsqrt.pop %v129
    %v131 = vld [vmem:[%s2] sm:$0xff]
    %v132 = vmul.f32 %v131, %v130
    %v133 = vld [vmem:[%s3] sm:$0xff]
    %v134 = vmul.f32 %v121, %v132
    %v135 = vsub.f32 %v133, %v134
    %137 = vset.pattern.permute.xlu0 0
    %138 = vperm.xlu0 %137, %v132
    %v139 = vpop.permute.xlu0 %138
    %v141 = vmul.f32 %v116, %v139
    %143 = vset.pattern.permute.xlu0 0
    %144 = vperm.xlu0 %143, %v135
    %v145 = vpop.permute.xlu0 %144
    %v147 = vadd.f32 %v141, %v145
    %vm148 = vcmp.gt.f32.partialorder %v147, 0.0
    %v149 = vmul.f32 %v147, 0.2
    %v150 = vsel %vm148, %v147, %v149
    %151 = vst [vmem:[#allocation5] sm:$0xff] %v150
    // Predicated region
    $region22: #{tpu_custom_call.1} parent=1 // pred_check
      _
    $region23: #{tpu_custom_call.1} parent=1 // pred_check_branch
      %153 = sbr.rel (0) target = $region25
    $region24: #{tpu_custom_call.1} parent=1 // pred_region
      %s155 = ssub.s32 128, 128
      %156 = vsyncadd [#allocation4], %s155
      %s158 = sshll.u32 [#allocation5], 4
      %s159 = int_to_ptr.vmem [resolvable:$true] %s158
      %161 = dma.vmem_to_hbm [thread:$0]  %s159, 128, %s4, [#allocation4]
    $region25: #{tpu_custom_call.1} parent=1 // pred_fallthru
      _
    // Predicated region
    $region26: #{tpu_custom_call.1} parent=1 // pred_check
      _
    $region27: #{tpu_custom_call.1} parent=1 // pred_check_branch
      %163 = sbr.rel (0) target = $region29
    $region28: #{tpu_custom_call.1} parent=1 // pred_region
      %164 = dma.done [#allocation4], 128
    $region29: #{tpu_custom_call.1} parent=1 // pred_fallthru
      _
    %165 = vsyncpa [#allocation3], 1
    %166 = vsyncpa [#allocation4], 1

</llo_original>
